<compile_context>
chip_gen: v7x
topology: tpu7x:2x2x1
jax: 0.10.0
libtpu: 0.0.40
codegen_flags: <defaults>
</compile_context>

<pallas_src>
import functools

import jax
import jax.numpy as jnp
from jax.experimental import pallas as pl
from jax.experimental.pallas import tpu as pltpu


def _round_up(a: int, m: int) -> int:
    return (a + m - 1) // m * m


# ---------------------------------------------------------------------------
# Kernels
# ---------------------------------------------------------------------------
def _mlp_body(x_i, x_j, w1a_ref, w1b_ref, b1_ref, w2_ref, b2_ref, out_ref):
    """Shared MLP math: concat folded into two MXU matmuls, f32 accumulation."""
    cdt = w1a_ref.dtype
    h = (
        jnp.dot(x_i.astype(cdt), w1a_ref[...], preferred_element_type=jnp.float32)
        + jnp.dot(x_j.astype(cdt), w1b_ref[...], preferred_element_type=jnp.float32)
        + b1_ref[...]
    )
    h = jnp.maximum(h, 0.0)
    out = (
        jnp.dot(h.astype(cdt), w2_ref[...], preferred_element_type=jnp.float32)
        + b2_ref[...]
    )
    out_ref[...] = out.astype(out_ref.dtype)


def _fused_gather_mlp_kernel(
    idx_ref, x_ref, w1a_ref, w1b_ref, b1_ref, w2_ref, b2_ref, out_ref
):
    """Row gather fused in-kernel via one-hot MXU matmuls against resident x."""
    be = idx_ref.shape[0]
    n_res = x_ref.shape[0]
    idx = idx_ref[...]                                           # (be, 2) int32
    iota = jax.lax.broadcasted_iota(jnp.int32, (be, n_res), 1)   # (be, N_res)
    # Note: out-of-range indices yield an all-zero one-hot row (silent), whereas
    # PyTorch indexing would raise -- behavioral, not numeric, divergence.
    oh_i = (idx[:, 0:1] == iota).astype(x_ref.dtype)
    oh_j = (idx[:, 1:2] == iota).astype(x_ref.dtype)
    x_i = jnp.dot(oh_i, x_ref[...], preferred_element_type=jnp.float32)
    x_j = jnp.dot(oh_j, x_ref[...], preferred_element_type=jnp.float32)
    _mlp_body(x_i, x_j, w1a_ref, w1b_ref, b1_ref, w2_ref, b2_ref, out_ref)


def _pregathered_mlp_kernel(
    xi_ref, xj_ref, w1a_ref, w1b_ref, b1_ref, w2_ref, b2_ref, out_ref
):
    """Fallback: x_i/x_j already gathered (JAX glue) and streamed per tile."""
    _mlp_body(
        xi_ref[...], xj_ref[...], w1a_ref, w1b_ref, b1_ref, w2_ref, b2_ref, out_ref
    )


# ---------------------------------------------------------------------------
# Wrapper
# ---------------------------------------------------------------------------
@functools.partial(
    jax.jit,
    static_argnames=("block_e", "use_bf16", "max_gather_nodes", "vmem_budget_bytes"),
)
def link_decoder_forward(
    x,
    edge_label_index,
    w1,
    b1,
    w2,
    b2,
    *,
    block_e: int = 512,
    use_bf16: bool = True,
    max_gather_nodes: int = 2048,
    vmem_budget_bytes: int = 40 * 1024 * 1024,
):
    """Pallas implementation of LinkDecoder.forward.

    Args:
      x:                [N, D] node features (float32 or bfloat16).
      edge_label_index: [2, E] integer edge endpoints.
      w1: [D, 2*D]  (PyTorch Linear weight layout: out_features x in_features)
      b1: [D]
      w2: [dim_out, D]
      b2: [dim_out]
      block_e:   requested edge-tile size (rows per grid step).
      use_bf16:  cast matmul inputs to bf16 (f32 accumulation) -- default on;
                 bf16 is MXU-native on v5e/v6e/v7x and halves HBM bytes.
      max_gather_nodes: max (padded) node count for the in-kernel one-hot
                 gather; larger graphs fall back to a JAX-side gather.
      vmem_budget_bytes: budget used to derive the edge tile / VMEM limit.
    Returns:
      [E, dim_out] predictions in x.dtype.
    """
    N, D = x.shape
    dim_out = w2.shape[0]
    E = edge_label_index.shape[1]

    # Empty edge set: a zero-length grid is not worth a pallas_call.
    if E == 0:
        return jnp.zeros((0, dim_out), x.dtype)

    cdt = jnp.bfloat16 if use_bf16 else x.dtype
    itemsize = jnp.dtype(cdt).itemsize

    # Weights: concat folded into two matmuls.  No lane padding anywhere --
    # full-extent blocks are legal for any size and keep HBM traffic minimal.
    w1t = jnp.transpose(w1).astype(cdt)            # [2D, D]
    w1a = w1t[:D]                                  # [D, D]  acts on x_i
    w1b = w1t[D:]                                  # [D, D]  acts on x_j
    w2t = jnp.transpose(w2).astype(cdt)            # [D, dim_out]
    b1r = b1.reshape(1, D).astype(jnp.float32)
    b2r = b2.reshape(1, dim_out).astype(jnp.float32)

    n_res = _round_up(N, 8)
    fuse_gather = (n_res <= max_gather_nodes) and (n_res * D * itemsize <= (8 << 20))

    # ---- VMEM-budgeted edge tile -------------------------------------------
    # Resident (single-buffered) bytes: weights + biases (+ node table if fused).
    resident_bytes = (2 * D * D + D * dim_out) * itemsize + (D + dim_out) * 4
    if fuse_gather:
        resident_bytes += n_res * D * itemsize
        # per edge-row: idx tile (2 bufs) + out tile (2 bufs) + one-hot /
        # gathered / hidden temporaries (f32).
        row_bytes = 2 * 2 * 4 + 2 * dim_out * 4 + 2 * n_res * itemsize + 3 * D * 4
    else:
        # per edge-row: x_i/x_j tiles (2 bufs each) + out tile (2 bufs) + hidden.
        row_bytes = 4 * D * itemsize + 2 * dim_out * 4 + 3 * D * 4

    be = max(8, min(_round_up(block_e, 8), _round_up(E, 8)))
    # Shrink only while over budget, and never below 128 rows (per-step overhead
    # + MXU utilization) unless E itself is tiny.
    while be > 128 and resident_bytes + be * row_bytes > vmem_budget_bytes:
        be = max(128, _round_up(be // 2, 8))

    Ep = _round_up(E, be)
    grid = (Ep // be,)

    need_bytes = resident_bytes + be * row_bytes
    # Safe on all generations: v7x has 64 MiB physical VMEM per TC.
    vmem_limit = int(min(max(need_bytes + (4 << 20), 24 << 20), 56 << 20))

    # Grid-invariant inputs: single-buffer them (constant index_map).
    def _resident_spec(shape):
        return pl.BlockSpec(shape, lambda i: (0, 0), pipeline_mode=pl.Buffered(1))

    w_specs = [
        _resident_spec((D, D)),          # W1a
        _resident_spec((D, D)),          # W1b
        _resident_spec((1, D)),          # b1
        _resident_spec((D, dim_out)),    # W2^T
        _resident_spec((1, dim_out)),    # b2
    ]
    # Output kept at the true dim_out (masked stores beat a 16x padded store
    # stream + post-kernel column slice for small dim_out).
    out_spec = pl.BlockSpec((be, dim_out), lambda i: (i, 0))
    out_shape = jax.ShapeDtypeStruct((Ep, dim_out), x.dtype)
    compiler_params = pltpu.CompilerParams(
        dimension_semantics=("parallel",),
        vmem_limit_bytes=vmem_limit,
    )
    weight_bytes = (2 * D * D + D * dim_out) * itemsize + (D + dim_out) * 4

    if fuse_gather:
        idx = jnp.transpose(edge_label_index.astype(jnp.int32))        # [E, 2]
        idx = jnp.pad(idx, ((0, Ep - E), (0, 0)))
        x_res = x.astype(cdt)                                          # cast once
        if n_res != N:
            x_res = jnp.pad(x_res, ((0, n_res - N), (0, 0)))

        cost = pl.CostEstimate(
            flops=2 * Ep * (2 * n_res * D + 2 * D * D + D * dim_out),
            transcendentals=0,
            bytes_accessed=Ep * 2 * 4
            + n_res * D * itemsize
            + weight_bytes
            + Ep * dim_out * jnp.dtype(x.dtype).itemsize,
        )

        out_p = pl.pallas_call(
            _fused_gather_mlp_kernel,
            out_shape=out_shape,
            grid_spec=pltpu.PrefetchScalarGridSpec(
                num_scalar_prefetch=0,
                grid=grid,
                in_specs=[
                    pl.BlockSpec((be, 2), lambda i: (i, 0)),   # edge-index tile
                    _resident_spec((n_res, D)),                # resident node feats
                ]
                + w_specs,
                out_specs=out_spec,
            ),
            compiler_params=compiler_params,
            cost_estimate=cost,
        )(idx, x_res, w1a, w1b, b1r, w2t, b2r)
    else:
        # TODO(synk): replace this JAX-side gather with an in-kernel DMA row
        # gather (scalar-prefetched indices + pltpu.make_async_copy from x held
        # in pl.ANY) for graphs too large for the resident one-hot path.
        x_c = x.astype(cdt)                        # cast once (N*D), not 2*E*D
        ei = edge_label_index.astype(jnp.int32)
        x_i = jnp.pad(x_c[ei[0]], ((0, Ep - E), (0, 0)))
        x_j = jnp.pad(x_c[ei[1]], ((0, Ep - E), (0, 0)))

        cost = pl.CostEstimate(
            flops=2 * Ep * (2 * D * D + D * dim_out),
            transcendentals=0,
            bytes_accessed=2 * Ep * D * itemsize
            + weight_bytes
            + Ep * dim_out * jnp.dtype(x.dtype).itemsize,
        )

        out_p = pl.pallas_call(
            _pregathered_mlp_kernel,
            out_shape=out_shape,
            grid_spec=pltpu.PrefetchScalarGridSpec(
                num_scalar_prefetch=0,
                grid=grid,
                in_specs=[
                    pl.BlockSpec((be, D), lambda i: (i, 0)),   # x_i tile
                    pl.BlockSpec((be, D), lambda i: (i, 0)),   # x_j tile
                ]
                + w_specs,
                out_specs=out_spec,
            ),
            compiler_params=compiler_params,
            cost_estimate=cost,
        )(x_i, x_j, w1a, w1b, b1r, w2t, b2r)

    # Strip edge-row padding only (rows are cheap; no column slice needed).
    return out_p[:E] if Ep != E else out_p


# ---------------------------------------------------------------------------
# Pure-JAX reference
# ---------------------------------------------------------------------------
def _reference(x, edge_label_index, w1, b1, w2, b2):
    x_i = x[edge_label_index[0]]
    x_j = x[edge_label_index[1]]
    cat = jnp.concatenate([x_i, x_j], axis=-1)
    h = jnp.maximum(cat @ w1.T + b1, 0.0)
    return h @ w2.T + b2


if __name__ == "__main__":
    # Small, deterministic setup (dim_in=32, dim_out=8, 16 nodes, 20 edges --
    # E deliberately not a multiple of 8 to exercise the row-padding path).
    dim_in = 32
    dim_out = 8
    num_nodes = 16
    num_edges = 20

    key = jax.random.PRNGKey(0)
    kx, ke0, ke1, kw1, kb1, kw2, kb2 = jax.random.split(key, 7)

    x = jax.random.normal(kx, (num_nodes, dim_in), dtype=jnp.float32)
    edge_label_index = jnp.stack(
        [
            jax.random.randint(ke0, (num_edges,), 0, num_nodes, dtype=jnp.int32),
            jax.random.randint(ke1, (num_edges,), 0, num_nodes, dtype=jnp.int32),
        ],
        axis=0,
    )  # [2, E]

    # Deterministic parameter init (PyTorch Linear default: U(-1/sqrt(fan_in), +)).
    bound1 = 1.0 / (2.0 * dim_in) ** 0.5
    w1 = jax.random.uniform(kw1, (dim_in, 2 * dim_in), jnp.float32, -bound1, bound1)
    b1 = jax.random.uniform(kb1, (dim_in,), jnp.float32, -bound1, bound1)
    bound2 = 1.0 / (1.0 * dim_in) ** 0.5
    w2 = jax.random.uniform(kw2, (dim_out, dim_in), jnp.float32, -bound2, bound2)
    b2 = jax.random.uniform(kb2, (dim_out,), jnp.float32, -bound2, bound2)

    ref = _reference(x, edge_label_index, w1, b1, w2, b2)

    # 1) f32 path, fused in-kernel gather: tight tolerance.
    out_f32 = link_decoder_forward(
        x, edge_label_index, w1, b1, w2, b2, use_bf16=False
    )
    out_f32 = jax.block_until_ready(out_f32)
    assert out_f32.shape == (num_edges, dim_out), out_f32.shape
    assert jnp.allclose(out_f32, ref, atol=1e-5, rtol=1e-5), float(
        jnp.max(jnp.abs(out_f32 - ref))
    )

    # 2) Default path (bf16 inputs, f32 accumulation), fused gather: loose tol.
    out_bf16 = link_decoder_forward(x, edge_label_index, w1, b1, w2, b2)
    out_bf16 = jax.block_until_ready(out_bf16)
    assert out_bf16.shape == (num_edges, dim_out), out_bf16.shape
    assert jnp.allclose(out_bf16, ref, atol=5e-2, rtol=5e-2), float(
        jnp.max(jnp.abs(out_bf16 - ref))
    )

    # 3) Large-graph fallback path (pre-gathered x_i/x_j), f32: tight tolerance.
    out_fb = link_decoder_forward(
        x, edge_label_index, w1, b1, w2, b2, use_bf16=False, max_gather_nodes=0
    )
    out_fb = jax.block_until_ready(out_fb)
    assert jnp.allclose(out_fb, ref, atol=1e-5, rtol=1e-5), float(
        jnp.max(jnp.abs(out_fb - ref))
    )

    print("KERNEL_OK")
</pallas_src>

<mosaic_0001>
module attributes {stable_mosaic.version = 11 : i64} {
  func.func @_fused_gather_mlp_kernel(%arg0: i32, %arg1: memref<24x2xi32, #tpu.memory_space<vmem>>, %arg2: memref<16x32xf32, #tpu.memory_space<vmem>>, %arg3: memref<32x32xf32, #tpu.memory_space<vmem>>, %arg4: memref<32x32xf32, #tpu.memory_space<vmem>>, %arg5: memref<1x32xf32, #tpu.memory_space<vmem>>, %arg6: memref<32x8xf32, #tpu.memory_space<vmem>>, %arg7: memref<1x8xf32, #tpu.memory_space<vmem>>, %arg8: memref<24x8xf32, #tpu.memory_space<vmem>>) attributes {dimension_semantics = [#tpu.dimension_semantics<parallel>], iteration_bounds = array<i64: 1>, scalar_prefetch = 0 : i64, scratch_operands = 0 : i64, tpu.core_type = #tpu.core_type<tc>, window_params = [{transform_indices = @transform_0, window_bounds = array<i64: 24, 2>}, {pipeline_mode = #tpu.pipeline_mode<synchronous>, transform_indices = @transform_1, window_bounds = array<i64: 16, 32>}, {pipeline_mode = #tpu.pipeline_mode<synchronous>, transform_indices = @transform_2, window_bounds = array<i64: 32, 32>}, {pipeline_mode = #tpu.pipeline_mode<synchronous>, transform_indices = @transform_3, window_bounds = array<i64: 32, 32>}, {pipeline_mode = #tpu.pipeline_mode<synchronous>, transform_indices = @transform_4, window_bounds = array<i64: 1, 32>}, {pipeline_mode = #tpu.pipeline_mode<synchronous>, transform_indices = @transform_5, window_bounds = array<i64: 32, 8>}, {pipeline_mode = #tpu.pipeline_mode<synchronous>, transform_indices = @transform_6, window_bounds = array<i64: 1, 8>}, {transform_indices = @transform_7, window_bounds = array<i64: 24, 8>}]} {
    %c0 = arith.constant 0 : index
    %c0_0 = arith.constant 0 : index
    %0 = vector.load %arg1[%c0, %c0_0] : memref<24x2xi32, #tpu.memory_space<vmem>>, vector<24x2xi32>
    %1 = tpu.iota {dimensions = array<i32: 1>} : vector<24x16xi32>
    %2 = vector.extract_strided_slice %0 {offsets = [0, 0], sizes = [24, 1], strides = [1, 1]} : vector<24x2xi32> to vector<24x1xi32>
    %3 = vector.broadcast %2 : vector<24x1xi32> to vector<24x16xi32>
    %4 = arith.cmpi eq, %3, %1 : vector<24x16xi32>
    %5 = arith.extui %4 : vector<24x16xi1> to vector<24x16xi32>
    %6 = arith.sitofp %5 : vector<24x16xi32> to vector<24x16xf32>
    %7 = vector.extract_strided_slice %0 {offsets = [0, 1], sizes = [24, 1], strides = [1, 1]} : vector<24x2xi32> to vector<24x1xi32>
    %8 = vector.broadcast %7 : vector<24x1xi32> to vector<24x16xi32>
    %9 = arith.cmpi eq, %8, %1 : vector<24x16xi32>
    %10 = arith.extui %9 : vector<24x16xi1> to vector<24x16xi32>
    %11 = arith.sitofp %10 : vector<24x16xi32> to vector<24x16xf32>
    %c0_1 = arith.constant 0 : index
    %c0_2 = arith.constant 0 : index
    %12 = vector.load %arg2[%c0_1, %c0_2] : memref<16x32xf32, #tpu.memory_space<vmem>>, vector<16x32xf32>
    %cst = arith.constant dense<0.000000e+00> : vector<24x32xf32>
    %13 = tpu.matmul %6, %12, %cst {dimension_numbers = #tpu.dot_dimension_numbers<[1], [0], [0], [1], [0, 0, 1, 1], [], []>} : vector<24x16xf32>, vector<16x32xf32>, vector<24x32xf32> -> vector<24x32xf32>
    %c0_3 = arith.constant 0 : index
    %c0_4 = arith.constant 0 : index
    %14 = vector.load %arg2[%c0_3, %c0_4] : memref<16x32xf32, #tpu.memory_space<vmem>>, vector<16x32xf32>
    %cst_5 = arith.constant dense<0.000000e+00> : vector<24x32xf32>
    %15 = tpu.matmul %11, %14, %cst_5 {dimension_numbers = #tpu.dot_dimension_numbers<[1], [0], [0], [1], [0, 0, 1, 1], [], []>} : vector<24x16xf32>, vector<16x32xf32>, vector<24x32xf32> -> vector<24x32xf32>
    %c0_6 = arith.constant 0 : index
    %c0_7 = arith.constant 0 : index
    %16 = vector.load %arg3[%c0_6, %c0_7] : memref<32x32xf32, #tpu.memory_space<vmem>>, vector<32x32xf32>
    %cst_8 = arith.constant dense<0.000000e+00> : vector<24x32xf32>
    %17 = tpu.matmul %13, %16, %cst_8 {dimension_numbers = #tpu.dot_dimension_numbers<[1], [0], [0], [1], [0, 0, 1, 1], [], []>} : vector<24x32xf32>, vector<32x32xf32>, vector<24x32xf32> -> vector<24x32xf32>
    %c0_9 = arith.constant 0 : index
    %c0_10 = arith.constant 0 : index
    %18 = vector.load %arg4[%c0_9, %c0_10] : memref<32x32xf32, #tpu.memory_space<vmem>>, vector<32x32xf32>
    %cst_11 = arith.constant dense<0.000000e+00> : vector<24x32xf32>
    %19 = tpu.matmul %15, %18, %cst_11 {dimension_numbers = #tpu.dot_dimension_numbers<[1], [0], [0], [1], [0, 0, 1, 1], [], []>} : vector<24x32xf32>, vector<32x32xf32>, vector<24x32xf32> -> vector<24x32xf32>
    %20 = arith.addf %17, %19 : vector<24x32xf32>
    %c0_12 = arith.constant 0 : index
    %c0_13 = arith.constant 0 : index
    %21 = vector.load %arg5[%c0_12, %c0_13] : memref<1x32xf32, #tpu.memory_space<vmem>>, vector<1x32xf32>
    %22 = vector.broadcast %21 : vector<1x32xf32> to vector<24x32xf32>
    %23 = arith.addf %20, %22 : vector<24x32xf32>
    %cst_14 = arith.constant 0.000000e+00 : f32
    %24 = vector.broadcast %cst_14 : f32 to vector<24x32xf32>
    %25 = arith.maximumf %23, %24 : vector<24x32xf32>
    %c0_15 = arith.constant 0 : index
    %c0_16 = arith.constant 0 : index
    %26 = vector.load %arg6[%c0_15, %c0_16] : memref<32x8xf32, #tpu.memory_space<vmem>>, vector<32x8xf32>
    %cst_17 = arith.constant dense<0.000000e+00> : vector<24x8xf32>
    %27 = tpu.matmul %25, %26, %cst_17 {dimension_numbers = #tpu.dot_dimension_numbers<[1], [0], [0], [1], [0, 0, 1, 1], [], []>} : vector<24x32xf32>, vector<32x8xf32>, vector<24x8xf32> -> vector<24x8xf32>
    %c0_18 = arith.constant 0 : index
    %c0_19 = arith.constant 0 : index
    %28 = vector.load %arg7[%c0_18, %c0_19] : memref<1x8xf32, #tpu.memory_space<vmem>>, vector<1x8xf32>
    %29 = vector.broadcast %28 : vector<1x8xf32> to vector<24x8xf32>
    %30 = arith.addf %27, %29 : vector<24x8xf32>
    %c0_20 = arith.constant 0 : index
    %c0_21 = arith.constant 0 : index
    %31 = vector.load %arg8[%c0_20, %c0_21] : memref<24x8xf32, #tpu.memory_space<vmem>>, vector<24x8xf32>
    tpu.vector_store %arg8[%c0_20, %c0_21], %30 {strides = array<i32>} : memref<24x8xf32, #tpu.memory_space<vmem>>, vector<24x8xf32>,
    return
  }
  func.func @transform_0(%arg0: i32) -> (i32, i32) {
    %c0_i32 = arith.constant 0 : i32
    %c0_i32_0 = arith.constant 0 : i32
    return %arg0, %c0_i32 : i32, i32
  }
  func.func @transform_1(%arg0: i32) -> (i32, i32) {
    %c0_i32 = arith.constant 0 : i32
    %c0_i32_0 = arith.constant 0 : i32
    %c0_i32_1 = arith.constant 0 : i32
    return %c0_i32, %c0_i32_0 : i32, i32
  }
  func.func @transform_2(%arg0: i32) -> (i32, i32) {
    %c0_i32 = arith.constant 0 : i32
    %c0_i32_0 = arith.constant 0 : i32
    %c0_i32_1 = arith.constant 0 : i32
    return %c0_i32, %c0_i32_0 : i32, i32
  }
  func.func @transform_3(%arg0: i32) -> (i32, i32) {
    %c0_i32 = arith.constant 0 : i32
    %c0_i32_0 = arith.constant 0 : i32
    %c0_i32_1 = arith.constant 0 : i32
    return %c0_i32, %c0_i32_0 : i32, i32
  }
  func.func @transform_4(%arg0: i32) -> (i32, i32) {
    %c0_i32 = arith.constant 0 : i32
    %c0_i32_0 = arith.constant 0 : i32
    %c0_i32_1 = arith.constant 0 : i32
    return %c0_i32, %c0_i32_0 : i32, i32
  }
  func.func @transform_5(%arg0: i32) -> (i32, i32) {
    %c0_i32 = arith.constant 0 : i32
    %c0_i32_0 = arith.constant 0 : i32
    %c0_i32_1 = arith.constant 0 : i32
    return %c0_i32, %c0_i32_0 : i32, i32
  }
  func.func @transform_6(%arg0: i32) -> (i32, i32) {
    %c0_i32 = arith.constant 0 : i32
    %c0_i32_0 = arith.constant 0 : i32
    %c0_i32_1 = arith.constant 0 : i32
    return %c0_i32, %c0_i32_0 : i32, i32
  }
  func.func @transform_7(%arg0: i32) -> (i32, i32) {
    %c0_i32 = arith.constant 0 : i32
    %c0_i32_0 = arith.constant 0 : i32
    return %arg0, %c0_i32 : i32, i32
  }
}

</mosaic_0001>

<llo_original>
// kernel: link_decoder_forward.1
$region0: #{link_decoder_forward.1}
  #allocation0 [shape = 'u32[]', space=smem, size = 0x4, offset = 0x4, fixed_abs, tag = 'smem constant byte address 0x4 - core index']
  #allocation1 [shape = 'u32[144,128]{1,0:T(1,128)}', space=vmem, size = 0x12000, scoped, tag = 'internal scratch']
  %s0 = inlined_call_operand.vmem [shape: s32[24,2], index: 0, kind: input, shape index: {}]
  %s1 = inlined_call_operand.vmem [shape: f32[16,32], index: 1, kind: input, shape index: {}]
  %s2 = inlined_call_operand.vmem [shape: f32[32,32], index: 2, kind: input, shape index: {}]
  %s3 = inlined_call_operand.vmem [shape: f32[32,32], index: 3, kind: input, shape index: {}]
  %s4 = inlined_call_operand.vmem [shape: f32[1,32], index: 4, kind: input, shape index: {}]
  %s5 = inlined_call_operand.vmem [shape: f32[32,8], index: 5, kind: input, shape index: {}]
  %s6 = inlined_call_operand.vmem [shape: f32[1,8], index: 6, kind: input, shape index: {}]
  %s7 = inlined_call_operand.vmem [shape: f32[24,8], index: 7, kind: output, shape index: {}]
  %s8 = sld [smem:[#allocation0]]
  $region38: #{link_decoder_forward.1} parent=0
    _
  %s10 = ssub.s32 1, %s8
  %s11 = scalar_select 0, %s10, %s8
  // Predicated region
  $region2: #{link_decoder_forward.1} parent=0 // pred_check
    _
  $region3: #{link_decoder_forward.1} parent=0 // pred_check_branch
    %13 = sbr.rel (0) target = $region5
  $region4: #{link_decoder_forward.1} parent=0 // pred_region
    _
  $region5: #{link_decoder_forward.1} parent=0 // pred_fallthru
    _
  // Predicated region
  $region6: #{link_decoder_forward.1} parent=0 // pred_check
    _
  $region7: #{link_decoder_forward.1} parent=0 // pred_check_branch
    %15 = sbr.rel (0) target = $region9
  $region8: #{link_decoder_forward.1} parent=0 // pred_region
    _
  $region9: #{link_decoder_forward.1} parent=0 // pred_fallthru
    _
  // Predicated region
  $region10: #{link_decoder_forward.1} parent=0 // pred_check
    _
  $region11: #{link_decoder_forward.1} parent=0 // pred_check_branch
    %17 = sbr.rel (0) target = $region13
  $region12: #{link_decoder_forward.1} parent=0 // pred_region
    _
  $region13: #{link_decoder_forward.1} parent=0 // pred_fallthru
    _
  // Predicated region
  $region14: #{link_decoder_forward.1} parent=0 // pred_check
    _
  $region15: #{link_decoder_forward.1} parent=0 // pred_check_branch
    %19 = sbr.rel (0) target = $region17
  $region16: #{link_decoder_forward.1} parent=0 // pred_region
    _
  $region17: #{link_decoder_forward.1} parent=0 // pred_fallthru
    _
  // Predicated region
  $region18: #{link_decoder_forward.1} parent=0 // pred_check
    _
  $region19: #{link_decoder_forward.1} parent=0 // pred_check_branch
    %21 = sbr.rel (0) target = $region21
  $region20: #{link_decoder_forward.1} parent=0 // pred_region
    _
  $region21: #{link_decoder_forward.1} parent=0 // pred_fallthru
    _
  // Predicated region
  $region22: #{link_decoder_forward.1} parent=0 // pred_check
    _
  $region23: #{link_decoder_forward.1} parent=0 // pred_check_branch
    %23 = sbr.rel (0) target = $region25
  $region24: #{link_decoder_forward.1} parent=0 // pred_region
    _
  $region25: #{link_decoder_forward.1} parent=0 // pred_fallthru
    _
  // Predicated region
  $region26: #{link_decoder_forward.1} parent=0 // pred_check
    _
  $region27: #{link_decoder_forward.1} parent=0 // pred_check_branch
    %25 = sbr.rel (0) target = $region29
  $region28: #{link_decoder_forward.1} parent=0 // pred_region
    _
  $region29: #{link_decoder_forward.1} parent=0 // pred_fallthru
    _
  %v26 = vld [vmem:[%s0] sm:$0xff]
  %v27 = vld [vmem:[%s0 + $0x8] sm:$0xff]
  %v28 = vld [vmem:[%s0 + $0x10] sm:$0xff]
  %v29 = vlaneseq
  %v30 = vand.u32 %v29, 127
  %31 = vset.pattern.permute.xlu0 0
  %32 = vperm.xlu0 %31, %v26
  %v33 = vpop.permute.xlu0 %32
  %34 = vset.pattern.permute.xlu0 0
  %35 = vperm.xlu0 %34, %v27
  %v36 = vpop.permute.xlu0 %35
  %37 = vset.pattern.permute.xlu0 0
  %38 = vperm.xlu0 %37, %v28
  %v39 = vpop.permute.xlu0 %38
  %vm40 = vcmp.eq.s32.totalorder %v33, %v30
  %vm41 = vcmp.eq.s32.totalorder %v36, %v30
  %vm42 = vcmp.eq.s32.totalorder %v39, %v30
  %v43 = vsel %vm40, 1, 0
  %v44 = vsel %vm41, 1, 0
  %v45 = vsel %vm42, 1, 0
  %v46 = vcvt.s32.f32 %v43
  %v47 = vcvt.s32.f32 %v44
  %v48 = vcvt.s32.f32 %v45
  %49 = vset.pattern.permute.xlu0 1
  %50 = vperm.xlu0 %49, %v26
  %v51 = vpop.permute.xlu0 %50
  %52 = vset.pattern.permute.xlu0 1
  %53 = vperm.xlu0 %52, %v27
  %v54 = vpop.permute.xlu0 %53
  %55 = vset.pattern.permute.xlu0 1
  %56 = vperm.xlu0 %55, %v28
  %v57 = vpop.permute.xlu0 %56
  %vm58 = vcmp.eq.s32.totalorder %v51, %v30
  %vm59 = vcmp.eq.s32.totalorder %v54, %v30
  %vm60 = vcmp.eq.s32.totalorder %v57, %v30
  %v61 = vsel %vm58, 1, 0
  %v62 = vsel %vm59, 1, 0
  %v63 = vsel %vm60, 1, 0
  %v64 = vcvt.s32.f32 %v61
  %v65 = vcvt.s32.f32 %v62
  %v66 = vcvt.s32.f32 %v63
  %v67 = vld [vmem:[%s1] sm:$0xff]
  %v68 = vld [vmem:[%s1 + $0x8] sm:$0xff]
  %vm69 = vcmask 130048
  %v71 = vsel %vm69, %v46, 0
  %v74 = vsel %vm69, %v47, 0
  %v77 = vsel %vm69, %v48, 0
  %79 = vmatprep.subr.mxu0 0.0
  %80 = vmatpush1.msra.mxu0 %v67
  %81 = vmatprep.subr.mxu0 0.0
  %82 = vmatpush1.msra.mxu0 %v68
  %83 = vmatprep.subr.mxu0 0.0
  %84 = vmatpush1.msra.mxu0 0.0
  %85 = vmatprep.subr.mxu0 0.0
  %86 = vmatpush1.msra.mxu0 0.0
  %87 = vmatprep.subr.mxu0 0.0
  %88 = vmatpush1.msra.mxu0 0.0
  %89 = vmatprep.subr.mxu0 0.0
  %90 = vmatpush1.msra.mxu0 0.0
  %91 = vmatprep.subr.mxu0 0.0
  %92 = vmatpush1.msra.mxu0 0.0
  %93 = vmatprep.subr.mxu0 0.0
  %94 = vmatpush1.msra.mxu0 0.0
  %95 = vmatprep.subr.mxu0 0.0
  %96 = vmatpush1.msra.mxu0 0.0
  %97 = vmatprep.subr.mxu0 0.0
  %98 = vmatpush1.msra.mxu0 0.0
  %99 = vmatprep.subr.mxu0 0.0
  %100 = vmatpush1.msra.mxu0 0.0
  %101 = vmatprep.subr.mxu0 0.0
  %102 = vmatpush1.msra.mxu0 0.0
  %103 = vmatprep.subr.mxu0 0.0
  %104 = vmatpush1.msra.mxu0 0.0
  %105 = vmatprep.subr.mxu0 0.0
  %106 = vmatpush1.msra.mxu0 0.0
  %107 = vmatprep.subr.mxu0 0.0
  %108 = vmatpush1.msra.mxu0 0.0
  %109 = vmatprep.subr.mxu0 0.0
  %110 = vmatpush1.msra.mxu0 0.0
  %111 = vmatprep.subr.mxu0 0.0
  %112 = vmatpush1.msra.mxu0 0.0
  %113 = vmatprep.subr.mxu0 0.0
  %114 = vmatpush1.msra.mxu0 0.0
  %115 = vmatprep.subr.mxu0 0.0
  %116 = vmatpush1.msra.mxu0 0.0
  %117 = vmatprep.subr.mxu0 0.0
  %118 = vmatpush1.msra.mxu0 0.0
  %119 = vmatprep.subr.mxu0 0.0
  %120 = vmatpush1.msra.mxu0 0.0
  %121 = vmatprep.subr.mxu0 0.0
  %122 = vmatpush1.msra.mxu0 0.0
  %123 = vmatprep.subr.mxu0 0.0
  %124 = vmatpush1.msra.mxu0 0.0
  %125 = vmatprep.subr.mxu0 0.0
  %126 = vmatpush1.msra.mxu0 0.0
  %127 = vmatprep.subr.mxu0 0.0
  %128 = vmatpush1.msra.mxu0 0.0
  %129 = vmatprep.subr.mxu0 0.0
  %130 = vmatpush1.msra.mxu0 0.0
  %131 = vmatprep.subr.mxu0 0.0
  %132 = vmatpush1.msra.mxu0 0.0
  %133 = vmatprep.subr.mxu0 0.0
  %134 = vmatpush1.msra.mxu0 0.0
  %135 = vmatprep.subr.mxu0 0.0
  %136 = vmatpush1.msra.mxu0 0.0
  %137 = vmatprep.subr.mxu0 0.0
  %138 = vmatpush1.msra.mxu0 0.0
  %139 = vmatprep.subr.mxu0 0.0
  %140 = vmatpush1.msra.mxu0 0.0
  %141 = vmatprep.subr.mxu0 0.0
  %142 = vmatpush1.msra.mxu0 0.0
  %143 = vmatprep.mubr.f32.mxu0 0.0
  %144 = vmatmul.mubr.f32.gmra.mrb[0].mxu0 %v71
  %v145 = vpop.f32.mrb[0].mxu0
  %v146 = vadd.f32 0.0, %v145
  %v147 = vpop.f32.mrb[0].mxu0
  %148 = vmatprep.mubr.f32.mxu0 0.0
  %149 = vmatmul.mubr.f32.gmra.mrb[0].mxu0 %v74
  %v150 = vpop.f32.mrb[0].mxu0
  %v151 = vadd.f32 0.0, %v150
  %v152 = vpop.f32.mrb[0].mxu0
  %153 = vmatprep.mubr.f32.mxu0 0.0
  %154 = vmatmul.mubr.f32.gmra.mrb[0].mxu0 %v77
  %v155 = vpop.f32.mrb[0].mxu0
  %v156 = vadd.f32 0.0, %v155
  %v157 = vpop.f32.mrb[0].mxu0
  %158 = vdwg.mxu0
  %v160 = vsel %vm69, %v64, 0
  %v163 = vsel %vm69, %v65, 0
  %v166 = vsel %vm69, %v66, 0
  %168 = vmatprep.subr.mxu0 0.0
  %169 = vmatpush1.msra.mxu0 %v67
  %170 = vmatprep.subr.mxu0 0.0
  %171 = vmatpush1.msra.mxu0 %v68
  %172 = vmatprep.subr.mxu0 0.0
  %173 = vmatpush1.msra.mxu0 0.0
  %174 = vmatprep.subr.mxu0 0.0
  %175 = vmatpush1.msra.mxu0 0.0
  %176 = vmatprep.subr.mxu0 0.0
  %177 = vmatpush1.msra.mxu0 0.0
  %178 = vmatprep.subr.mxu0 0.0
  %179 = vmatpush1.msra.mxu0 0.0
  %180 = vmatprep.subr.mxu0 0.0
  %181 = vmatpush1.msra.mxu0 0.0
  %182 = vmatprep.subr.mxu0 0.0
  %183 = vmatpush1.msra.mxu0 0.0
  %184 = vmatprep.subr.mxu0 0.0
  %185 = vmatpush1.msra.mxu0 0.0
  %186 = vmatprep.subr.mxu0 0.0
  %187 = vmatpush1.msra.mxu0 0.0
  %188 = vmatprep.subr.mxu0 0.0
  %189 = vmatpush1.msra.mxu0 0.0
  %190 = vmatprep.subr.mxu0 0.0
  %191 = vmatpush1.msra.mxu0 0.0
  %192 = vmatprep.subr.mxu0 0.0
  %193 = vmatpush1.msra.mxu0 0.0
  %194 = vmatprep.subr.mxu0 0.0
  %195 = vmatpush1.msra.mxu0 0.0
  %196 = vmatprep.subr.mxu0 0.0
  %197 = vmatpush1.msra.mxu0 0.0
  %198 = vmatprep.subr.mxu0 0.0
  %199 = vmatpush1.msra.mxu0 0.0
  %200 = vmatprep.subr.mxu0 0.0
  %201 = vmatpush1.msra.mxu0 0.0
  %202 = vmatprep.subr.mxu0 0.0
  %203 = vmatpush1.msra.mxu0 0.0
  %204 = vmatprep.subr.mxu0 0.0
  %205 = vmatpush1.msra.mxu0 0.0
  %206 = vmatprep.subr.mxu0 0.0
  %207 = vmatpush1.msra.mxu0 0.0
  %208 = vmatprep.subr.mxu0 0.0
  %209 = vmatpush1.msra.mxu0 0.0
  %210 = vmatprep.subr.mxu0 0.0
  %211 = vmatpush1.msra.mxu0 0.0
  %212 = vmatprep.subr.mxu0 0.0
  %213 = vmatpush1.msra.mxu0 0.0
  %214 = vmatprep.subr.mxu0 0.0
  %215 = vmatpush1.msra.mxu0 0.0
  %216 = vmatprep.subr.mxu0 0.0
  %217 = vmatpush1.msra.mxu0 0.0
  %218 = vmatprep.subr.mxu0 0.0
  %219 = vmatpush1.msra.mxu0 0.0
  %220 = vmatprep.subr.mxu0 0.0
  %221 = vmatpush1.msra.mxu0 0.0
  %222 = vmatprep.subr.mxu0 0.0
  %223 = vmatpush1.msra.mxu0 0.0
  %224 = vmatprep.subr.mxu0 0.0
  %225 = vmatpush1.msra.mxu0 0.0
  %226 = vmatprep.subr.mxu0 0.0
  %227 = vmatpush1.msra.mxu0 0.0
  %228 = vmatprep.subr.mxu0 0.0
  %229 = vmatpush1.msra.mxu0 0.0
  %230 = vmatprep.subr.mxu0 0.0
  %231 = vmatpush1.msra.mxu0 0.0
  %232 = vmatprep.mubr.f32.mxu0 0.0
  %233 = vmatmul.mubr.f32.gmra.mrb[0].mxu0 %v160
  %v234 = vpop.f32.mrb[0].mxu0
  %v235 = vadd.f32 0.0, %v234
  %v236 = vpop.f32.mrb[0].mxu0
  %237 = vmatprep.mubr.f32.mxu0 0.0
  %238 = vmatmul.mubr.f32.gmra.mrb[0].mxu0 %v163
  %v239 = vpop.f32.mrb[0].mxu0
  %v240 = vadd.f32 0.0, %v239
  %v241 = vpop.f32.mrb[0].mxu0
  %242 = vmatprep.mubr.f32.mxu0 0.0
  %243 = vmatmul.mubr.f32.gmra.mrb[0].mxu0 %v166
  %v244 = vpop.f32.mrb[0].mxu0
  %v245 = vadd.f32 0.0, %v244
  %v246 = vpop.f32.mrb[0].mxu0
  %247 = vdwg.mxu0
  %v248 = vld [vmem:[%s2] sm:$0xff]
  %v249 = vld [vmem:[%s2 + $0x8] sm:$0xff]
  %v250 = vld [vmem:[%s2 + $0x10] sm:$0xff]
  %v251 = vld [vmem:[%s2 + $0x18] sm:$0xff]
  %v252 = vld [vmem:[%s3] sm:$0xff]
  %v253 = vld [vmem:[%s3 + $0x8] sm:$0xff]
  %v254 = vld [vmem:[%s3 + $0x10] sm:$0xff]
  %v255 = vld [vmem:[%s3 + $0x18] sm:$0xff]
  %vm256 = vcmask 261120
  %v258 = vsel %vm256, %v235, 0
  %v261 = vsel %vm256, %v240, 0
  %v264 = vsel %vm256, %v245, 0
  %266 = vmatprep.subr.mxu0 0.0
  %267 = vmatpush1.msra.mxu0 %v252
  %268 = vmatprep.subr.mxu0 0.0
  %269 = vmatpush1.msra.mxu0 %v253
  %270 = vmatprep.subr.mxu0 0.0
  %271 = vmatpush1.msra.mxu0 %v254
  %272 = vmatprep.subr.mxu0 0.0
  %273 = vmatpush1.msra.mxu0 %v255
  %274 = vmatprep.subr.mxu0 0.0
  %275 = vmatpush1.msra.mxu0 0.0
  %276 = vmatprep.subr.mxu0 0.0
  %277 = vmatpush1.msra.mxu0 0.0
  %278 = vmatprep.subr.mxu0 0.0
  %279 = vmatpush1.msra.mxu0 0.0
  %280 = vmatprep.subr.mxu0 0.0
  %281 = vmatpush1.msra.mxu0 0.0
  %282 = vmatprep.subr.mxu0 0.0
  %283 = vmatpush1.msra.mxu0 0.0
  %284 = vmatprep.subr.mxu0 0.0
  %285 = vmatpush1.msra.mxu0 0.0
  %286 = vmatprep.subr.mxu0 0.0
  %287 = vmatpush1.msra.mxu0 0.0
  %288 = vmatprep.subr.mxu0 0.0
  %289 = vmatpush1.msra.mxu0 0.0
  %290 = vmatprep.subr.mxu0 0.0
  %291 = vmatpush1.msra.mxu0 0.0
  %292 = vmatprep.subr.mxu0 0.0
  %293 = vmatpush1.msra.mxu0 0.0
  %294 = vmatprep.subr.mxu0 0.0
  %295 = vmatpush1.msra.mxu0 0.0
  %296 = vmatprep.subr.mxu0 0.0
  %297 = vmatpush1.msra.mxu0 0.0
  %298 = vmatprep.subr.mxu0 0.0
  %299 = vmatpush1.msra.mxu0 0.0
  %300 = vmatprep.subr.mxu0 0.0
  %301 = vmatpush1.msra.mxu0 0.0
  %302 = vmatprep.subr.mxu0 0.0
  %303 = vmatpush1.msra.mxu0 0.0
  %304 = vmatprep.subr.mxu0 0.0
  %305 = vmatpush1.msra.mxu0 0.0
  %306 = vmatprep.subr.mxu0 0.0
  %307 = vmatpush1.msra.mxu0 0.0
  %308 = vmatprep.subr.mxu0 0.0
  %309 = vmatpush1.msra.mxu0 0.0
  %310 = vmatprep.subr.mxu0 0.0
  %311 = vmatpush1.msra.mxu0 0.0
  %312 = vmatprep.subr.mxu0 0.0
  %313 = vmatpush1.msra.mxu0 0.0
  %314 = vmatprep.subr.mxu0 0.0
  %315 = vmatpush1.msra.mxu0 0.0
  %316 = vmatprep.subr.mxu0 0.0
  %317 = vmatpush1.msra.mxu0 0.0
  %318 = vmatprep.subr.mxu0 0.0
  %319 = vmatpush1.msra.mxu0 0.0
  %320 = vmatprep.subr.mxu0 0.0
  %321 = vmatpush1.msra.mxu0 0.0
  %322 = vmatprep.subr.mxu0 0.0
  %323 = vmatpush1.msra.mxu0 0.0
  %324 = vmatprep.subr.mxu0 0.0
  %325 = vmatpush1.msra.mxu0 0.0
  %326 = vmatprep.subr.mxu0 0.0
  %327 = vmatpush1.msra.mxu0 0.0
  %328 = vmatprep.subr.mxu0 0.0
  %329 = vmatpush1.msra.mxu0 0.0
  %330 = vmatprep.mubr.f32.mxu0 0.0
  %331 = vmatmul.mubr.f32.gmra.mrb[0].mxu0 %v258
  %v332 = vpop.f32.mrb[0].mxu0
  %v333 = vadd.f32 0.0, %v332
  %v334 = vpop.f32.mrb[0].mxu0
  %335 = vmatprep.mubr.f32.mxu0 0.0
  %336 = vmatmul.mubr.f32.gmra.mrb[0].mxu0 %v261
  %v337 = vpop.f32.mrb[0].mxu0
  %v338 = vadd.f32 0.0, %v337
  %v339 = vpop.f32.mrb[0].mxu0
  %340 = vmatprep.mubr.f32.mxu0 0.0
  %341 = vmatmul.mubr.f32.gmra.mrb[0].mxu0 %v264
  %v342 = vpop.f32.mrb[0].mxu0
  %v343 = vadd.f32 0.0, %v342
  %v344 = vpop.f32.mrb[0].mxu0
  %345 = vdwg.mxu0
  %v347 = vsel %vm256, %v146, 0
  %v350 = vsel %vm256, %v151, 0
  %v353 = vsel %vm256, %v156, 0
  %355 = vmatprep.subr.mxu0 0.0
  %356 = vmatpush1.msra.mxu0 %v248
  %357 = vmatprep.subr.mxu0 0.0
  %358 = vmatpush1.msra.mxu0 %v249
  %359 = vmatprep.subr.mxu0 0.0
  %360 = vmatpush1.msra.mxu0 %v250
  %361 = vmatprep.subr.mxu0 0.0
  %362 = vmatpush1.msra.mxu0 %v251
  %363 = vmatprep.subr.mxu0 0.0
  %364 = vmatpush1.msra.mxu0 0.0
  %365 = vmatprep.subr.mxu0 0.0
  %366 = vmatpush1.msra.mxu0 0.0
  %367 = vmatprep.subr.mxu0 0.0
  %368 = vmatpush1.msra.mxu0 0.0
  %369 = vmatprep.subr.mxu0 0.0
  %370 = vmatpush1.msra.mxu0 0.0
  %371 = vmatprep.subr.mxu0 0.0
  %372 = vmatpush1.msra.mxu0 0.0
  %373 = vmatprep.subr.mxu0 0.0
  %374 = vmatpush1.msra.mxu0 0.0
  %375 = vmatprep.subr.mxu0 0.0
  %376 = vmatpush1.msra.mxu0 0.0
  %377 = vmatprep.subr.mxu0 0.0
  %378 = vmatpush1.msra.mxu0 0.0
  %379 = vmatprep.subr.mxu0 0.0
  %380 = vmatpush1.msra.mxu0 0.0
  %381 = vmatprep.subr.mxu0 0.0
  %382 = vmatpush1.msra.mxu0 0.0
  %383 = vmatprep.subr.mxu0 0.0
  %384 = vmatpush1.msra.mxu0 0.0
  %385 = vmatprep.subr.mxu0 0.0
  %386 = vmatpush1.msra.mxu0 0.0
  %387 = vmatprep.subr.mxu0 0.0
  %388 = vmatpush1.msra.mxu0 0.0
  %389 = vmatprep.subr.mxu0 0.0
  %390 = vmatpush1.msra.mxu0 0.0
  %391 = vmatprep.subr.mxu0 0.0
  %392 = vmatpush1.msra.mxu0 0.0
  %393 = vmatprep.subr.mxu0 0.0
  %394 = vmatpush1.msra.mxu0 0.0
  %395 = vmatprep.subr.mxu0 0.0
  %396 = vmatpush1.msra.mxu0 0.0
  %397 = vmatprep.subr.mxu0 0.0
  %398 = vmatpush1.msra.mxu0 0.0
  %399 = vmatprep.subr.mxu0 0.0
  %400 = vmatpush1.msra.mxu0 0.0
  %401 = vmatprep.subr.mxu0 0.0
  %402 = vmatpush1.msra.mxu0 0.0
  %403 = vmatprep.subr.mxu0 0.0
  %404 = vmatpush1.msra.mxu0 0.0
  %405 = vmatprep.subr.mxu0 0.0
  %406 = vmatpush1.msra.mxu0 0.0
  %407 = vmatprep.subr.mxu0 0.0
  %408 = vmatpush1.msra.mxu0 0.0
  %409 = vmatprep.subr.mxu0 0.0
  %410 = vmatpush1.msra.mxu0 0.0
  %411 = vmatprep.subr.mxu0 0.0
  %412 = vmatpush1.msra.mxu0 0.0
  %413 = vmatprep.subr.mxu0 0.0
  %414 = vmatpush1.msra.mxu0 0.0
  %415 = vmatprep.subr.mxu0 0.0
  %416 = vmatpush1.msra.mxu0 0.0
  %417 = vmatprep.subr.mxu0 0.0
  %418 = vmatpush1.msra.mxu0 0.0
  %419 = vmatprep.mubr.f32.mxu0 0.0
  %420 = vmatmul.mubr.f32.gmra.mrb[0].mxu0 %v347
  %v421 = vpop.f32.mrb[0].mxu0
  %v422 = vadd.f32 %v333, %v421
  %v423 = vpop.f32.mrb[0].mxu0
  %424 = vmatprep.mubr.f32.mxu0 0.0
  %425 = vmatmul.mubr.f32.gmra.mrb[0].mxu0 %v350
  %v426 = vpop.f32.mrb[0].mxu0
  %v427 = vadd.f32 %v338, %v426
  %v428 = vpop.f32.mrb[0].mxu0
  %429 = vmatprep.mubr.f32.mxu0 0.0
  %430 = vmatmul.mubr.f32.gmra.mrb[0].mxu0 %v353
  %v431 = vpop.f32.mrb[0].mxu0
  %v432 = vadd.f32 %v343, %v431
  %v433 = vpop.f32.mrb[0].mxu0
  %434 = vdwg.mxu0
  %v435 = vld [vmem:[%s4] sm:$0x1]
  %v437 = vlaneseq
  %v438 = vshrl.u32 %v437, 7
  %v439 = vsub.s32 0, %v438
  %v440 = vrot.slane %v435, %v439
  %v442 = vadd.f32 %v422, %v440
  %v443 = vadd.f32 %v427, %v440
  %v444 = vadd.f32 %v432, %v440
  %v445 = vmax.f32 %v442, 0.0
  %v446 = vmax.f32 %v443, 0.0
  %v447 = vmax.f32 %v444, 0.0
  %v448 = vld [vmem:[%s5] sm:$0xff]
  %v449 = vld [vmem:[%s5 + $0x8] sm:$0xff]
  %v450 = vld [vmem:[%s5 + $0x10] sm:$0xff]
  %v451 = vld [vmem:[%s5 + $0x18] sm:$0xff]
  %v452 = vld [vmem:[%s6] sm:$0x1]
  %v454 = vlaneseq
  %v455 = vshrl.u32 %v454, 7
  %v456 = vsub.s32 0, %v455
  %v457 = vrot.slane %v452, %v456
  %v460 = vsel %vm256, %v445, 0
  %v463 = vsel %vm256, %v446, 0
  %v466 = vsel %vm256, %v447, 0
  %468 = vmatprep.subr.mxu0 0.0
  %469 = vmatpush1.msra.mxu0 %v448
  %470 = vmatprep.subr.mxu0 0.0
  %471 = vmatpush1.msra.mxu0 %v449
  %472 = vmatprep.subr.mxu0 0.0
  %473 = vmatpush1.msra.mxu0 %v450
  %474 = vmatprep.subr.mxu0 0.0
  %475 = vmatpush1.msra.mxu0 %v451
  %476 = vmatprep.subr.mxu0 0.0
  %477 = vmatpush1.msra.mxu0 0.0
  %478 = vmatprep.subr.mxu0 0.0
  %479 = vmatpush1.msra.mxu0 0.0
  %480 = vmatprep.subr.mxu0 0.0
  %481 = vmatpush1.msra.mxu0 0.0
  %482 = vmatprep.subr.mxu0 0.0
  %483 = vmatpush1.msra.mxu0 0.0
  %484 = vmatprep.subr.mxu0 0.0
  %485 = vmatpush1.msra.mxu0 0.0
  %486 = vmatprep.subr.mxu0 0.0
  %487 = vmatpush1.msra.mxu0 0.0
  %488 = vmatprep.subr.mxu0 0.0
  %489 = vmatpush1.msra.mxu0 0.0
  %490 = vmatprep.subr.mxu0 0.0
  %491 = vmatpush1.msra.mxu0 0.0
  %492 = vmatprep.subr.mxu0 0.0
  %493 = vmatpush1.msra.mxu0 0.0
  %494 = vmatprep.subr.mxu0 0.0
  %495 = vmatpush1.msra.mxu0 0.0
  %496 = vmatprep.subr.mxu0 0.0
  %497 = vmatpush1.msra.mxu0 0.0
  %498 = vmatprep.subr.mxu0 0.0
  %499 = vmatpush1.msra.mxu0 0.0
  %500 = vmatprep.subr.mxu0 0.0
  %501 = vmatpush1.msra.mxu0 0.0
  %502 = vmatprep.subr.mxu0 0.0
  %503 = vmatpush1.msra.mxu0 0.0
  %504 = vmatprep.subr.mxu0 0.0
  %505 = vmatpush1.msra.mxu0 0.0
  %506 = vmatprep.subr.mxu0 0.0
  %507 = vmatpush1.msra.mxu0 0.0
  %508 = vmatprep.subr.mxu0 0.0
  %509 = vmatpush1.msra.mxu0 0.0
  %510 = vmatprep.subr.mxu0 0.0
  %511 = vmatpush1.msra.mxu0 0.0
  %512 = vmatprep.subr.mxu0 0.0
  %513 = vmatpush1.msra.mxu0 0.0
  %514 = vmatprep.subr.mxu0 0.0
  %515 = vmatpush1.msra.mxu0 0.0
  %516 = vmatprep.subr.mxu0 0.0
  %517 = vmatpush1.msra.mxu0 0.0
  %518 = vmatprep.subr.mxu0 0.0
  %519 = vmatpush1.msra.mxu0 0.0
  %520 = vmatprep.subr.mxu0 0.0
  %521 = vmatpush1.msra.mxu0 0.0
  %522 = vmatprep.subr.mxu0 0.0
  %523 = vmatpush1.msra.mxu0 0.0
  %524 = vmatprep.subr.mxu0 0.0
  %525 = vmatpush1.msra.mxu0 0.0
  %526 = vmatprep.subr.mxu0 0.0
  %527 = vmatpush1.msra.mxu0 0.0
  %528 = vmatprep.subr.mxu0 0.0
  %529 = vmatpush1.msra.mxu0 0.0
  %530 = vmatprep.subr.mxu0 0.0
  %531 = vmatpush1.msra.mxu0 0.0
  %532 = vmatprep.mubr.f32.mxu0 0.0
  %533 = vmatmul.mubr.f32.gmra.mrb[0].mxu0 %v460
  %v534 = vpop.f32.mrb[0].mxu0
  %v535 = vadd.f32 %v457, %v534
  %v536 = vpop.f32.mrb[0].mxu0
  %537 = vmatprep.mubr.f32.mxu0 0.0
  %538 = vmatmul.mubr.f32.gmra.mrb[0].mxu0 %v463
  %v539 = vpop.f32.mrb[0].mxu0
  %v540 = vadd.f32 %v457, %v539
  %v541 = vpop.f32.mrb[0].mxu0
  %542 = vmatprep.mubr.f32.mxu0 0.0
  %543 = vmatmul.mubr.f32.gmra.mrb[0].mxu0 %v466
  %v544 = vpop.f32.mrb[0].mxu0
  %v545 = vadd.f32 %v457, %v544
  %v546 = vpop.f32.mrb[0].mxu0
  %547 = vdwg.mxu0
  %vm548 = vcmask 64512
  %549 = vst.msk [vmem:[%s7] sm:$0xff] %vm548, %v535
  %550 = vst.msk [vmem:[%s7 + $0x8] sm:$0xff] %vm548, %v540
  %551 = vst.msk [vmem:[%s7 + $0x10] sm:$0xff] %vm548, %v545
  // Predicated region
  $region30: #{link_decoder_forward.1} parent=0 // pred_check
    _
  $region31: #{link_decoder_forward.1} parent=0 // pred_check_branch
    %553 = sbr.rel (0) target = $region33
  $region32: #{link_decoder_forward.1} parent=0 // pred_region
    _
  $region33: #{link_decoder_forward.1} parent=0 // pred_fallthru
    _
  // Predicated region
  $region34: #{link_decoder_forward.1} parent=0 // pred_check
    _
  $region35: #{link_decoder_forward.1} parent=0 // pred_check_branch
    %555 = sbr.rel (0) target = $region37
  $region36: #{link_decoder_forward.1} parent=0 // pred_region
    _
  $region37: #{link_decoder_forward.1} parent=0 // pred_fallthru
    _

</llo_original>
